<compile_context>
chip_gen: v7x
topology: tpu7x:2x2x1
jax: 0.10.0
libtpu: 0.0.40
codegen_flags: <defaults>
</compile_context>

<pallas_src>
import functools

import jax
import jax.numpy as jnp
from jax.experimental import pallas as pl
from jax.experimental.pallas import tpu as pltpu

NUM_CLASSES = 8
LAMBDA_CLASS = 1.0
LAMBDA_NOOBJ = 10.0
LAMBDA_OBJ = 1.0
LAMBDA_BOX = 10.0

# accumulated quantities per scale:
# [noobj_sum, noobj_cnt, obj_sum, obj_cnt, box_sum, cls_sum]
_NQ = 6


def _round_up(x, m):
    return -(-x // m) * m


def _num_tensorcores():
    """Best-effort TensorCore count (v7x has 2/chip); safe fallback = 2."""
    try:
        info = pltpu.get_tpu_info()
    except Exception:
        return 2
    for name in ("num_cores", "core_count", "num_tensorcores", "tensorcore_count"):
        v = getattr(info, name, None)
        if isinstance(v, int) and 1 <= v <= 4:
            return v
    return 2


def _fold_rows(v):
    """(TR,128) -> (8,128) by summing groups of 8 sublanes (pure VPU adds)."""
    out = v[0:8]
    for r in range(8, v.shape[0], 8):
        out = out + v[r:r + 8]
    return out


def _yolo_kernel(sid_ref, pred_ref, tgt_ref, acc_ref, *,
                 steps_per_core, num_classes):
    core = pl.program_id(0)
    step = pl.program_id(1)
    g = core * steps_per_core + step
    sid = sid_ref[g]                      # scale id for this step

    @pl.when(step == 0)
    def _init():
        acc_ref[...] = jnp.zeros_like(acc_ref)

    f32 = jnp.float32
    pc = lambda k: pred_ref[k].astype(f32)   # (TR,128) lane-dense channel
    tc = lambda k: tgt_ref[k].astype(f32)

    conf_t = tc(0)
    obj_m = conf_t == 1.0
    noobj_m = conf_t == 0.0               # padded rows carry conf = -1 -> neither

    # ---- conf channel: shared exp(-|x|) for BCE(target=0) and sigmoid ------
    x0 = pc(0)
    e0 = jnp.exp(-jnp.abs(x0))
    bce = jnp.maximum(x0, 0.0) + jnp.log1p(e0)          # BCEWithLogits(x, 0)
    inv0 = pl.reciprocal(1.0 + e0, approx=True)
    sig0 = jnp.where(x0 >= 0.0, inv0, e0 * inv0)        # sigmoid(x0)

    # ---- box decode (x/y sigmoids via tanh; anchors already folded in) -----
    sig_x = 0.5 + 0.5 * jnp.tanh(0.5 * pc(1))
    sig_y = 0.5 + 0.5 * jnp.tanh(0.5 * pc(2))
    pw = pc(3)                       # = raw_w_logit + log(anchor_w)
    ph = pc(4)                       # = raw_h_logit + log(anchor_h)
    bw = jnp.exp(pw)
    bh = jnp.exp(ph)

    tx = tc(1)
    ty = tc(2)
    tw = tc(3)
    th = tc(4)

    # ---- midpoint IoU (areas simplified: bw*bh, tw*th are already >= 0) ----
    iw = jnp.maximum(jnp.minimum(sig_x + 0.5 * bw, tx + 0.5 * tw)
                     - jnp.maximum(sig_x - 0.5 * bw, tx - 0.5 * tw), 0.0)
    ih = jnp.maximum(jnp.minimum(sig_y + 0.5 * bh, ty + 0.5 * th)
                     - jnp.maximum(sig_y - 0.5 * bh, ty - 0.5 * th), 0.0)
    inter = iw * ih
    union = bw * bh + tw * th - inter + 1e-6
    iou = inter * pl.reciprocal(union, approx=True)

    # ---- object loss term: (sigmoid(conf) - iou*target_conf)^2 -------------
    obj_sq = (sig0 - iou * conf_t) ** 2

    # ---- box regression term (anchor folded -> plain log, no divide) -------
    d1 = sig_x - tx
    d2 = sig_y - ty
    d3 = pw - jnp.log(tw + 1e-16)
    d4 = ph - jnp.log(th + 1e-16)
    box_sq = d1 * d1 + d2 * d2 + d3 * d3 + d4 * d4

    # ---- class cross entropy, unrolled over lane-dense class channels ------
    # (kept in f32 for exact parity with the f32 reference; bf16 CE on
    #  v6e/v7x is a further ~20-30% compute win if a 1e-2 drift is OK)
    label = tc(5)
    logits = [pc(5 + k) for k in range(num_classes)]
    mx = logits[0]
    for k in range(1, num_classes):
        mx = jnp.maximum(mx, logits[k])
    sum_e = jnp.zeros_like(mx)
    picked = jnp.zeros_like(mx)
    for k in range(num_classes):
        sum_e = sum_e + jnp.exp(logits[k] - mx)
        picked = picked + jnp.where(label == float(k), logits[k], 0.0)
    ce = mx + jnp.log(sum_e) - picked

    # ---- masked (8,128) vector partial sums ---------------------------------
    zero = jnp.zeros_like(conf_t)
    one = jnp.ones_like(conf_t)
    partials = (
        _fold_rows(jnp.where(noobj_m, bce, zero)),     # noobj_sum
        _fold_rows(jnp.where(noobj_m, one, zero)),     # noobj_cnt
        _fold_rows(jnp.where(obj_m, obj_sq, zero)),    # obj_sum
        _fold_rows(jnp.where(obj_m, one, zero)),       # obj_cnt
        _fold_rows(jnp.where(obj_m, box_sq, zero)),    # box_sum
        _fold_rows(jnp.where(obj_m, ce, zero)),        # cls_sum
    )

    # ---- single dynamic-offset accumulation into the resident output block --
    base = sid * (_NQ * 8)
    for q, p in enumerate(partials):
        start = pl.multiple_of(base + q * 8, 8)
        acc_ref[0, pl.ds(start, 8), :] = acc_ref[0, pl.ds(start, 8), :] + p


def yolo_loss_pallas(predictions, targets, scaled_anchors, num_classes=NUM_CLASSES):
    """predictions[i]: (B, 3, S, S, 5+NC); targets[i]: (B, 3, S, S, 6)."""
    num_scales = len(predictions)
    c_dim = 5 + num_classes
    anchors = jnp.asarray(scaled_anchors, jnp.float32).reshape(num_scales, 3, 2)
    log_anchors = jnp.log(anchors)                       # (num_scales, 3, 2)

    pred_dtype = predictions[0].dtype
    tgt_dtype = targets[0].dtype

    num_cores = _num_tensorcores()

    # ---- tiling: tr sublane rows per step (multiple of 16 for bf16 packing) -
    scale_rows = [3 * int(p.shape[0]) * int(p.shape[2]) * int(p.shape[3])
                  for p in predictions]
    max_rows = max(scale_rows)
    tr = max(16, min(256, _round_up(-(-max_rows // 128), 16)))
    rows_per_step = tr * 128

    scale_steps = [-(-r // rows_per_step) for r in scale_rows]
    total_steps = sum(scale_steps)
    total_steps += (-total_steps) % num_cores            # equal work per core
    steps_per_core = total_steps // num_cores
    R = total_steps * tr                                  # sublane rows total

    # ---- single preallocated channel-major HBM buffers (no concat) ----------
    # target conf pre-initialized to -1 -> every unwritten (padded) row is
    # masked out of both the obj and noobj reductions.
    pred_all = jnp.zeros((c_dim, R, 128), pred_dtype)
    tgt_all = jnp.zeros((6, R, 128), tgt_dtype).at[0].set(
        jnp.asarray(-1.0, tgt_dtype))

    sid_parts = []
    row0 = 0
    for s_idx, (pred, tgt) in enumerate(zip(predictions, targets)):
        b, a, s, s2, cc = pred.shape
        assert a == 3 and cc == c_dim and s2 == s
        rows = a * b * s * s

        # channel-major, anchor-major rows: (C, A, B*S*S)
        p_cm = jnp.transpose(pred, (4, 1, 0, 2, 3)).reshape(c_dim, a, b * s * s)
        # fold log(anchor) into the w/h logits -> kernel needs no anchors
        la = jnp.transpose(log_anchors[s_idx])            # (2, 3)
        pwh = p_cm[3:5].astype(jnp.float32) + la[:, :, None]
        p_cm = p_cm.at[3:5].set(pwh.astype(pred.dtype))
        p_flat = p_cm.reshape(c_dim, rows)

        t_flat = jnp.transpose(tgt, (4, 1, 0, 2, 3)).reshape(6, rows)

        pad = (-rows) % 128                               # lane pad to 128
        if pad:
            p_flat = jnp.pad(p_flat, ((0, 0), (0, pad)))
            t_flat = jnp.pad(t_flat, ((0, 0), (0, pad)))
            t_flat = t_flat.at[0, rows:].set(-1.0)        # sentinel: masked
        nrow = (rows + pad) // 128

        pred_all = pred_all.at[:, row0:row0 + nrow, :].set(
            p_flat.reshape(c_dim, nrow, 128).astype(pred_dtype))
        tgt_all = tgt_all.at[:, row0:row0 + nrow, :].set(
            t_flat.reshape(6, nrow, 128).astype(tgt_dtype))

        sid_parts.append(jnp.full((scale_steps[s_idx],), s_idx, jnp.int32))
        row0 += scale_steps[s_idx] * tr                    # step-aligned offset

    pad_steps = total_steps - sum(scale_steps)
    if pad_steps:
        sid_parts.append(jnp.zeros((pad_steps,), jnp.int32))
    sid_arr = jnp.concatenate(sid_parts)

    # ---- VMEM budget (double-buffered pred+tgt blocks + accumulator) --------
    pred_bytes = c_dim * tr * 128 * jnp.dtype(pred_dtype).itemsize
    tgt_bytes = 6 * tr * 128 * jnp.dtype(tgt_dtype).itemsize
    need = 2 * (pred_bytes + tgt_bytes) + num_scales * _NQ * 8 * 128 * 4
    vmem_limit = int(min(max(need + (4 << 20), 32 << 20), 56 << 20))

    kernel = functools.partial(
        _yolo_kernel, steps_per_core=steps_per_core, num_classes=num_classes)

    acc = pl.pallas_call(
        kernel,
        out_shape=jax.ShapeDtypeStruct((num_cores, num_scales * _NQ * 8, 128),
                                       jnp.float32),
        grid_spec=pltpu.PrefetchScalarGridSpec(
            num_scalar_prefetch=1,
            grid=(num_cores, steps_per_core),
            in_specs=[
                pl.BlockSpec((c_dim, tr, 128),
                             lambda c, i, sid: (0, c * steps_per_core + i, 0)),
                pl.BlockSpec((6, tr, 128),
                             lambda c, i, sid: (0, c * steps_per_core + i, 0)),
            ],
            out_specs=pl.BlockSpec((1, num_scales * _NQ * 8, 128),
                                   lambda c, i, sid: (c, 0, 0)),
        ),
        compiler_params=pltpu.CompilerParams(
            dimension_semantics=("parallel", "arbitrary"),
            vmem_limit_bytes=vmem_limit),
    )(sid_arr, pred_all, tgt_all)

    # tiny epilogue in plain JAX: cross-core/lane reduction + weighted means
    per = acc.reshape(num_cores, num_scales, _NQ, 8, 128).sum(axis=(0, 3, 4))
    s_noobj, c_noobj, s_obj, c_obj, s_box, s_cls = (per[:, q] for q in range(_NQ))
    # NOTE: like the PyTorch reference, a scale with zero obj/noobj cells
    # divides by zero; clamp here if that is a concern for your data.
    loss = (LAMBDA_BOX * s_box / (4.0 * c_obj)
            + LAMBDA_OBJ * s_obj / c_obj
            + LAMBDA_NOOBJ * s_noobj / c_noobj
            + LAMBDA_CLASS * s_cls / c_obj)
    return jnp.sum(loss)


def yolo_loss_ref(predictions, targets, scaled_anchors):
    """Pure-JAX reference mirroring the PyTorch forward."""
    total = 0.0
    for i, (pred, tgt) in enumerate(zip(predictions, targets)):
        anc = scaled_anchors[i].reshape(1, 3, 1, 1, 2)
        obj = tgt[..., 0] == 1
        noobj = tgt[..., 0] == 0
        n_obj = jnp.sum(obj.astype(jnp.float32))
        n_noobj = jnp.sum(noobj.astype(jnp.float32))

        x = pred[..., 0]
        y = tgt[..., 0]
        bce = jnp.maximum(x, 0.0) - x * y + jnp.log1p(jnp.exp(-jnp.abs(x)))
        no_object_loss = jnp.sum(jnp.where(noobj, bce, 0.0)) / n_noobj

        bxy = jax.nn.sigmoid(pred[..., 1:3])
        bwh = jnp.exp(pred[..., 3:5]) * anc
        b1x1, b1y1 = bxy[..., 0] - bwh[..., 0] / 2, bxy[..., 1] - bwh[..., 1] / 2
        b1x2, b1y2 = bxy[..., 0] + bwh[..., 0] / 2, bxy[..., 1] + bwh[..., 1] / 2
        t = tgt[..., 1:5]
        b2x1, b2y1 = t[..., 0] - t[..., 2] / 2, t[..., 1] - t[..., 3] / 2
        b2x2, b2y2 = t[..., 0] + t[..., 2] / 2, t[..., 1] + t[..., 3] / 2
        inter = (jnp.maximum(jnp.minimum(b1x2, b2x2) - jnp.maximum(b1x1, b2x1), 0.0)
                 * jnp.maximum(jnp.minimum(b1y2, b2y2) - jnp.maximum(b1y1, b2y1), 0.0))
        iou = inter / (jnp.abs((b1x2 - b1x1) * (b1y2 - b1y1))
                       + jnp.abs((b2x2 - b2x1) * (b2y2 - b2y1)) - inter + 1e-6)
        obj_sq = (jax.nn.sigmoid(pred[..., 0]) - iou * tgt[..., 0]) ** 2
        object_loss = jnp.sum(jnp.where(obj, obj_sq, 0.0)) / n_obj

        twh = jnp.log(1e-16 + tgt[..., 3:5] / anc)
        d = jnp.concatenate([bxy - tgt[..., 1:3], pred[..., 3:5] - twh], axis=-1)
        box_loss = jnp.sum(jnp.where(obj[..., None], d * d, 0.0)) / (4.0 * n_obj)

        logits = pred[..., 5:]
        lse = jax.nn.logsumexp(logits, axis=-1)
        labels = tgt[..., 5].astype(jnp.int32)
        picked = jnp.take_along_axis(logits, labels[..., None], axis=-1)[..., 0]
        class_loss = jnp.sum(jnp.where(obj, lse - picked, 0.0)) / n_obj

        total = total + (LAMBDA_BOX * box_loss + LAMBDA_OBJ * object_loss
                         + LAMBDA_NOOBJ * no_object_loss + LAMBDA_CLASS * class_loss)
    return total


if __name__ == "__main__":
    key = jax.random.PRNGKey(0)
    B = 2
    scales = [8, 4]                       # two small feature-map sizes
    C = 5 + NUM_CLASSES

    # Deterministic "scaled_anchors": (num_scales, 3, 2), positive (w, h).
    scaled_anchors = jnp.array(
        [[[1.0, 1.5], [2.0, 1.0], [0.5, 0.5]],
         [[1.2, 0.8], [0.9, 2.0], [1.5, 1.5]]], dtype=jnp.float32)

    predictions, targets = [], []
    for i, S in enumerate(scales):
        key, k1, k2, k3, k4, k5 = jax.random.split(key, 6)
        pred = jax.random.normal(k1, (B, 3, S, S, C), jnp.float32)

        conf = (jax.random.uniform(k2, (B, 3, S, S)) < 0.2).astype(jnp.float32)
        conf = conf.at[0, 0, 0, 0].set(1.0)    # guarantee at least one obj
        conf = conf.at[0, 0, 0, 1].set(0.0)    # guarantee at least one noobj
        xy = jax.random.uniform(k3, (B, 3, S, S, 2), minval=0.0, maxval=1.0)
        wh = jax.random.uniform(k4, (B, 3, S, S, 2), minval=0.5, maxval=2.0)
        cls = jax.random.randint(k5, (B, 3, S, S), 0, NUM_CLASSES).astype(jnp.float32)
        tgt = jnp.concatenate(
            [conf[..., None], xy, wh, cls[..., None]], axis=-1).astype(jnp.float32)

        predictions.append(pred)
        targets.append(tgt)

    loss = yolo_loss_pallas(predictions, targets, scaled_anchors)
    loss = jax.block_until_ready(loss)

    ref = yolo_loss_ref(predictions, targets, scaled_anchors)
    assert jnp.isfinite(loss), "kernel produced non-finite loss"
    assert jnp.allclose(loss, ref, rtol=1e-3, atol=1e-3), (loss, ref)
    print("KERNEL_OK")
</pallas_src>

<mosaic_0001>
module attributes {stable_mosaic.version = 11 : i64} {
  func.func @_yolo_kernel(%arg0: i32, %arg1: i32, %arg2: memref<2xi32, #tpu.memory_space<smem>>, %arg3: memref<13x16x128xf32, #tpu.memory_space<vmem>>, %arg4: memref<6x16x128xf32, #tpu.memory_space<vmem>>, %arg5: memref<1x96x128xf32, #tpu.memory_space<vmem>>) attributes {dimension_semantics = [#tpu.dimension_semantics<parallel>, #tpu.dimension_semantics<arbitrary>], iteration_bounds = array<i64: 2, 1>, scalar_prefetch = 1 : i64, scratch_operands = 0 : i64, tpu.core_type = #tpu.core_type<tc>, window_params = [{transform_indices = @transform_0, window_bounds = array<i64: 13, 16, 128>}, {transform_indices = @transform_1, window_bounds = array<i64: 6, 16, 128>}, {transform_indices = @transform_2, window_bounds = array<i64: 1, 96, 128>}]} {
    %c1_i32 = arith.constant 1 : i32
    %0 = arith.muli %arg0, %c1_i32 : i32
    %1 = arith.addi %0, %arg1 : i32
    %2 = arith.index_cast %1 : i32 to index
    %3 = memref.load %arg2[%2] : memref<2xi32, #tpu.memory_space<smem>>
    %c0_i32 = arith.constant 0 : i32
    %4 = arith.cmpi eq, %arg1, %c0_i32 : i32
    %5 = arith.extui %4 : i1 to i32
    %c0_i32_0 = arith.constant 0 : i32
    %6 = arith.cmpi ne, %5, %c0_i32_0 : i32
    scf.if %6 {
      %cst_114 = arith.constant 0.000000e+00 : f32
      %306 = vector.broadcast %cst_114 : f32 to vector<1x96x128xf32>
      %c0_115 = arith.constant 0 : index
      %c0_116 = arith.constant 0 : index
      %c0_117 = arith.constant 0 : index
      %307 = vector.load %arg5[%c0_115, %c0_116, %c0_117] : memref<1x96x128xf32, #tpu.memory_space<vmem>>, vector<1x96x128xf32>
      tpu.vector_store %arg5[%c0_115, %c0_116, %c0_117], %306 {strides = array<i32>} : memref<1x96x128xf32, #tpu.memory_space<vmem>>, vector<1x96x128xf32>,
    } else {
    }
    %c0 = arith.constant 0 : index
    %c0_1 = arith.constant 0 : index
    %c0_2 = arith.constant 0 : index
    %7 = vector.load %arg4[%c0, %c0_1, %c0_2] : memref<6x16x128xf32, #tpu.memory_space<vmem>>, vector<1x16x128xf32>
    %8 = vector.shape_cast %7 : vector<1x16x128xf32> to vector<16x128xf32>
    %cst = arith.constant 1.000000e+00 : f32
    %9 = vector.broadcast %cst : f32 to vector<16x128xf32>
    %10 = arith.cmpf oeq, %8, %9 : vector<16x128xf32>
    %cst_3 = arith.constant 0.000000e+00 : f32
    %11 = vector.broadcast %cst_3 : f32 to vector<16x128xf32>
    %12 = arith.cmpf oeq, %8, %11 : vector<16x128xf32>
    %c0_4 = arith.constant 0 : index
    %c0_5 = arith.constant 0 : index
    %c0_6 = arith.constant 0 : index
    %13 = vector.load %arg3[%c0_4, %c0_5, %c0_6] : memref<13x16x128xf32, #tpu.memory_space<vmem>>, vector<1x16x128xf32>
    %14 = vector.shape_cast %13 : vector<1x16x128xf32> to vector<16x128xf32>
    %15 = math.absf %14 : vector<16x128xf32>
    %cst_7 = arith.constant 0.000000e+00 : f32
    %16 = vector.broadcast %cst_7 : f32 to vector<16x128xf32>
    %17 = arith.subf %16, %15 : vector<16x128xf32>
    %18 = math.exp %17 : vector<16x128xf32>
    %cst_8 = arith.constant 0.000000e+00 : f32
    %19 = vector.broadcast %cst_8 : f32 to vector<16x128xf32>
    %20 = arith.maximumf %14, %19 : vector<16x128xf32>
    %21 = math.log1p %18 : vector<16x128xf32>
    %22 = arith.addf %20, %21 : vector<16x128xf32>
    %cst_9 = arith.constant 1.000000e+00 : f32
    %23 = vector.broadcast %cst_9 : f32 to vector<16x128xf32>
    %24 = arith.addf %23, %18 : vector<16x128xf32>
    %25 = tpu.reciprocal %24 {approx = true} : vector<16x128xf32> -> vector<16x128xf32>
    %cst_10 = arith.constant 0.000000e+00 : f32
    %26 = vector.broadcast %cst_10 : f32 to vector<16x128xf32>
    %27 = arith.cmpf oge, %14, %26 : vector<16x128xf32>
    %28 = arith.mulf %18, %25 : vector<16x128xf32>
    %29 = arith.select %27, %25, %28 : vector<16x128xi1>, vector<16x128xf32>
    %c1 = arith.constant 1 : index
    %c0_11 = arith.constant 0 : index
    %c0_12 = arith.constant 0 : index
    %30 = vector.load %arg3[%c1, %c0_11, %c0_12] : memref<13x16x128xf32, #tpu.memory_space<vmem>>, vector<1x16x128xf32>
    %31 = vector.shape_cast %30 : vector<1x16x128xf32> to vector<16x128xf32>
    %cst_13 = arith.constant 5.000000e-01 : f32
    %32 = vector.broadcast %cst_13 : f32 to vector<16x128xf32>
    %33 = arith.mulf %32, %31 : vector<16x128xf32>
    %34 = math.tanh %33 : vector<16x128xf32>
    %cst_14 = arith.constant 5.000000e-01 : f32
    %35 = vector.broadcast %cst_14 : f32 to vector<16x128xf32>
    %36 = arith.mulf %35, %34 : vector<16x128xf32>
    %cst_15 = arith.constant 5.000000e-01 : f32
    %37 = vector.broadcast %cst_15 : f32 to vector<16x128xf32>
    %38 = arith.addf %37, %36 : vector<16x128xf32>
    %c2 = arith.constant 2 : index
    %c0_16 = arith.constant 0 : index
    %c0_17 = arith.constant 0 : index
    %39 = vector.load %arg3[%c2, %c0_16, %c0_17] : memref<13x16x128xf32, #tpu.memory_space<vmem>>, vector<1x16x128xf32>
    %40 = vector.shape_cast %39 : vector<1x16x128xf32> to vector<16x128xf32>
    %cst_18 = arith.constant 5.000000e-01 : f32
    %41 = vector.broadcast %cst_18 : f32 to vector<16x128xf32>
    %42 = arith.mulf %41, %40 : vector<16x128xf32>
    %43 = math.tanh %42 : vector<16x128xf32>
    %cst_19 = arith.constant 5.000000e-01 : f32
    %44 = vector.broadcast %cst_19 : f32 to vector<16x128xf32>
    %45 = arith.mulf %44, %43 : vector<16x128xf32>
    %cst_20 = arith.constant 5.000000e-01 : f32
    %46 = vector.broadcast %cst_20 : f32 to vector<16x128xf32>
    %47 = arith.addf %46, %45 : vector<16x128xf32>
    %c3 = arith.constant 3 : index
    %c0_21 = arith.constant 0 : index
    %c0_22 = arith.constant 0 : index
    %48 = vector.load %arg3[%c3, %c0_21, %c0_22] : memref<13x16x128xf32, #tpu.memory_space<vmem>>, vector<1x16x128xf32>
    %49 = vector.shape_cast %48 : vector<1x16x128xf32> to vector<16x128xf32>
    %c4 = arith.constant 4 : index
    %c0_23 = arith.constant 0 : index
    %c0_24 = arith.constant 0 : index
    %50 = vector.load %arg3[%c4, %c0_23, %c0_24] : memref<13x16x128xf32, #tpu.memory_space<vmem>>, vector<1x16x128xf32>
    %51 = vector.shape_cast %50 : vector<1x16x128xf32> to vector<16x128xf32>
    %52 = math.exp %49 : vector<16x128xf32>
    %53 = math.exp %51 : vector<16x128xf32>
    %c1_25 = arith.constant 1 : index
    %c0_26 = arith.constant 0 : index
    %c0_27 = arith.constant 0 : index
    %54 = vector.load %arg4[%c1_25, %c0_26, %c0_27] : memref<6x16x128xf32, #tpu.memory_space<vmem>>, vector<1x16x128xf32>
    %55 = vector.shape_cast %54 : vector<1x16x128xf32> to vector<16x128xf32>
    %c2_28 = arith.constant 2 : index
    %c0_29 = arith.constant 0 : index
    %c0_30 = arith.constant 0 : index
    %56 = vector.load %arg4[%c2_28, %c0_29, %c0_30] : memref<6x16x128xf32, #tpu.memory_space<vmem>>, vector<1x16x128xf32>
    %57 = vector.shape_cast %56 : vector<1x16x128xf32> to vector<16x128xf32>
    %c3_31 = arith.constant 3 : index
    %c0_32 = arith.constant 0 : index
    %c0_33 = arith.constant 0 : index
    %58 = vector.load %arg4[%c3_31, %c0_32, %c0_33] : memref<6x16x128xf32, #tpu.memory_space<vmem>>, vector<1x16x128xf32>
    %59 = vector.shape_cast %58 : vector<1x16x128xf32> to vector<16x128xf32>
    %c4_34 = arith.constant 4 : index
    %c0_35 = arith.constant 0 : index
    %c0_36 = arith.constant 0 : index
    %60 = vector.load %arg4[%c4_34, %c0_35, %c0_36] : memref<6x16x128xf32, #tpu.memory_space<vmem>>, vector<1x16x128xf32>
    %61 = vector.shape_cast %60 : vector<1x16x128xf32> to vector<16x128xf32>
    %cst_37 = arith.constant 5.000000e-01 : f32
    %62 = vector.broadcast %cst_37 : f32 to vector<16x128xf32>
    %63 = arith.mulf %62, %52 : vector<16x128xf32>
    %64 = arith.addf %38, %63 : vector<16x128xf32>
    %cst_38 = arith.constant 5.000000e-01 : f32
    %65 = vector.broadcast %cst_38 : f32 to vector<16x128xf32>
    %66 = arith.mulf %65, %59 : vector<16x128xf32>
    %67 = arith.addf %55, %66 : vector<16x128xf32>
    %68 = arith.minimumf %64, %67 : vector<16x128xf32>
    %cst_39 = arith.constant 5.000000e-01 : f32
    %69 = vector.broadcast %cst_39 : f32 to vector<16x128xf32>
    %70 = arith.mulf %69, %52 : vector<16x128xf32>
    %71 = arith.subf %38, %70 : vector<16x128xf32>
    %cst_40 = arith.constant 5.000000e-01 : f32
    %72 = vector.broadcast %cst_40 : f32 to vector<16x128xf32>
    %73 = arith.mulf %72, %59 : vector<16x128xf32>
    %74 = arith.subf %55, %73 : vector<16x128xf32>
    %75 = arith.maximumf %71, %74 : vector<16x128xf32>
    %76 = arith.subf %68, %75 : vector<16x128xf32>
    %cst_41 = arith.constant 0.000000e+00 : f32
    %77 = vector.broadcast %cst_41 : f32 to vector<16x128xf32>
    %78 = arith.maximumf %76, %77 : vector<16x128xf32>
    %cst_42 = arith.constant 5.000000e-01 : f32
    %79 = vector.broadcast %cst_42 : f32 to vector<16x128xf32>
    %80 = arith.mulf %79, %53 : vector<16x128xf32>
    %81 = arith.addf %47, %80 : vector<16x128xf32>
    %cst_43 = arith.constant 5.000000e-01 : f32
    %82 = vector.broadcast %cst_43 : f32 to vector<16x128xf32>
    %83 = arith.mulf %82, %61 : vector<16x128xf32>
    %84 = arith.addf %57, %83 : vector<16x128xf32>
    %85 = arith.minimumf %81, %84 : vector<16x128xf32>
    %cst_44 = arith.constant 5.000000e-01 : f32
    %86 = vector.broadcast %cst_44 : f32 to vector<16x128xf32>
    %87 = arith.mulf %86, %53 : vector<16x128xf32>
    %88 = arith.subf %47, %87 : vector<16x128xf32>
    %cst_45 = arith.constant 5.000000e-01 : f32
    %89 = vector.broadcast %cst_45 : f32 to vector<16x128xf32>
    %90 = arith.mulf %89, %61 : vector<16x128xf32>
    %91 = arith.subf %57, %90 : vector<16x128xf32>
    %92 = arith.maximumf %88, %91 : vector<16x128xf32>
    %93 = arith.subf %85, %92 : vector<16x128xf32>
    %cst_46 = arith.constant 0.000000e+00 : f32
    %94 = vector.broadcast %cst_46 : f32 to vector<16x128xf32>
    %95 = arith.maximumf %93, %94 : vector<16x128xf32>
    %96 = arith.mulf %78, %95 : vector<16x128xf32>
    %97 = arith.mulf %52, %53 : vector<16x128xf32>
    %98 = arith.mulf %59, %61 : vector<16x128xf32>
    %99 = arith.addf %97, %98 : vector<16x128xf32>
    %100 = arith.subf %99, %96 : vector<16x128xf32>
    %cst_47 = arith.constant 9.99999997E-7 : f32
    %101 = vector.broadcast %cst_47 : f32 to vector<16x128xf32>
    %102 = arith.addf %100, %101 : vector<16x128xf32>
    %103 = tpu.reciprocal %102 {approx = true} : vector<16x128xf32> -> vector<16x128xf32>
    %104 = arith.mulf %96, %103 : vector<16x128xf32>
    %105 = arith.mulf %104, %8 : vector<16x128xf32>
    %106 = arith.subf %29, %105 : vector<16x128xf32>
    %107 = arith.mulf %106, %106 : vector<16x128xf32>
    %108 = arith.subf %38, %55 : vector<16x128xf32>
    %109 = arith.subf %47, %57 : vector<16x128xf32>
    %cst_48 = arith.constant 1.000000e-16 : f32
    %110 = vector.broadcast %cst_48 : f32 to vector<16x128xf32>
    %111 = arith.addf %59, %110 : vector<16x128xf32>
    %112 = math.log %111 : vector<16x128xf32>
    %113 = arith.subf %49, %112 : vector<16x128xf32>
    %cst_49 = arith.constant 1.000000e-16 : f32
    %114 = vector.broadcast %cst_49 : f32 to vector<16x128xf32>
    %115 = arith.addf %61, %114 : vector<16x128xf32>
    %116 = math.log %115 : vector<16x128xf32>
    %117 = arith.subf %51, %116 : vector<16x128xf32>
    %118 = arith.mulf %108, %108 : vector<16x128xf32>
    %119 = arith.mulf %109, %109 : vector<16x128xf32>
    %120 = arith.addf %118, %119 : vector<16x128xf32>
    %121 = arith.mulf %113, %113 : vector<16x128xf32>
    %122 = arith.addf %120, %121 : vector<16x128xf32>
    %123 = arith.mulf %117, %117 : vector<16x128xf32>
    %124 = arith.addf %122, %123 : vector<16x128xf32>
    %c5 = arith.constant 5 : index
    %c0_50 = arith.constant 0 : index
    %c0_51 = arith.constant 0 : index
    %125 = vector.load %arg4[%c5, %c0_50, %c0_51] : memref<6x16x128xf32, #tpu.memory_space<vmem>>, vector<1x16x128xf32>
    %126 = vector.shape_cast %125 : vector<1x16x128xf32> to vector<16x128xf32>
    %c5_52 = arith.constant 5 : index
    %c0_53 = arith.constant 0 : index
    %c0_54 = arith.constant 0 : index
    %127 = vector.load %arg3[%c5_52, %c0_53, %c0_54] : memref<13x16x128xf32, #tpu.memory_space<vmem>>, vector<1x16x128xf32>
    %128 = vector.shape_cast %127 : vector<1x16x128xf32> to vector<16x128xf32>
    %c6 = arith.constant 6 : index
    %c0_55 = arith.constant 0 : index
    %c0_56 = arith.constant 0 : index
    %129 = vector.load %arg3[%c6, %c0_55, %c0_56] : memref<13x16x128xf32, #tpu.memory_space<vmem>>, vector<1x16x128xf32>
    %130 = vector.shape_cast %129 : vector<1x16x128xf32> to vector<16x128xf32>
    %c7 = arith.constant 7 : index
    %c0_57 = arith.constant 0 : index
    %c0_58 = arith.constant 0 : index
    %131 = vector.load %arg3[%c7, %c0_57, %c0_58] : memref<13x16x128xf32, #tpu.memory_space<vmem>>, vector<1x16x128xf32>
    %132 = vector.shape_cast %131 : vector<1x16x128xf32> to vector<16x128xf32>
    %c8 = arith.constant 8 : index
    %c0_59 = arith.constant 0 : index
    %c0_60 = arith.constant 0 : index
    %133 = vector.load %arg3[%c8, %c0_59, %c0_60] : memref<13x16x128xf32, #tpu.memory_space<vmem>>, vector<1x16x128xf32>
    %134 = vector.shape_cast %133 : vector<1x16x128xf32> to vector<16x128xf32>
    %c9 = arith.constant 9 : index
    %c0_61 = arith.constant 0 : index
    %c0_62 = arith.constant 0 : index
    %135 = vector.load %arg3[%c9, %c0_61, %c0_62] : memref<13x16x128xf32, #tpu.memory_space<vmem>>, vector<1x16x128xf32>
    %136 = vector.shape_cast %135 : vector<1x16x128xf32> to vector<16x128xf32>
    %c10 = arith.constant 10 : index
    %c0_63 = arith.constant 0 : index
    %c0_64 = arith.constant 0 : index
    %137 = vector.load %arg3[%c10, %c0_63, %c0_64] : memref<13x16x128xf32, #tpu.memory_space<vmem>>, vector<1x16x128xf32>
    %138 = vector.shape_cast %137 : vector<1x16x128xf32> to vector<16x128xf32>
    %c11 = arith.constant 11 : index
    %c0_65 = arith.constant 0 : index
    %c0_66 = arith.constant 0 : index
    %139 = vector.load %arg3[%c11, %c0_65, %c0_66] : memref<13x16x128xf32, #tpu.memory_space<vmem>>, vector<1x16x128xf32>
    %140 = vector.shape_cast %139 : vector<1x16x128xf32> to vector<16x128xf32>
    %c12 = arith.constant 12 : index
    %c0_67 = arith.constant 0 : index
    %c0_68 = arith.constant 0 : index
    %141 = vector.load %arg3[%c12, %c0_67, %c0_68] : memref<13x16x128xf32, #tpu.memory_space<vmem>>, vector<1x16x128xf32>
    %142 = vector.shape_cast %141 : vector<1x16x128xf32> to vector<16x128xf32>
    %143 = arith.maximumf %128, %130 : vector<16x128xf32>
    %144 = arith.maximumf %143, %132 : vector<16x128xf32>
    %145 = arith.maximumf %144, %134 : vector<16x128xf32>
    %146 = arith.maximumf %145, %136 : vector<16x128xf32>
    %147 = arith.maximumf %146, %138 : vector<16x128xf32>
    %148 = arith.maximumf %147, %140 : vector<16x128xf32>
    %149 = arith.maximumf %148, %142 : vector<16x128xf32>
    %cst_69 = arith.constant 0.000000e+00 : f32
    %150 = vector.broadcast %cst_69 : f32 to vector<16x128xf32>
    %cst_70 = arith.constant 0.000000e+00 : f32
    %151 = vector.broadcast %cst_70 : f32 to vector<16x128xf32>
    %152 = arith.subf %128, %149 : vector<16x128xf32>
    %153 = math.exp %152 : vector<16x128xf32>
    %154 = arith.addf %150, %153 : vector<16x128xf32>
    %cst_71 = arith.constant 0.000000e+00 : f32
    %155 = vector.broadcast %cst_71 : f32 to vector<16x128xf32>
    %156 = arith.cmpf oeq, %126, %155 : vector<16x128xf32>
    %cst_72 = arith.constant 0.000000e+00 : f32
    %157 = vector.broadcast %cst_72 : f32 to vector<16x128xf32>
    %158 = arith.select %156, %128, %157 : vector<16x128xi1>, vector<16x128xf32>
    %159 = arith.addf %151, %158 : vector<16x128xf32>
    %160 = arith.subf %130, %149 : vector<16x128xf32>
    %161 = math.exp %160 : vector<16x128xf32>
    %162 = arith.addf %154, %161 : vector<16x128xf32>
    %cst_73 = arith.constant 1.000000e+00 : f32
    %163 = vector.broadcast %cst_73 : f32 to vector<16x128xf32>
    %164 = arith.cmpf oeq, %126, %163 : vector<16x128xf32>
    %cst_74 = arith.constant 0.000000e+00 : f32
    %165 = vector.broadcast %cst_74 : f32 to vector<16x128xf32>
    %166 = arith.select %164, %130, %165 : vector<16x128xi1>, vector<16x128xf32>
    %167 = arith.addf %159, %166 : vector<16x128xf32>
    %168 = arith.subf %132, %149 : vector<16x128xf32>
    %169 = math.exp %168 : vector<16x128xf32>
    %170 = arith.addf %162, %169 : vector<16x128xf32>
    %cst_75 = arith.constant 2.000000e+00 : f32
    %171 = vector.broadcast %cst_75 : f32 to vector<16x128xf32>
    %172 = arith.cmpf oeq, %126, %171 : vector<16x128xf32>
    %cst_76 = arith.constant 0.000000e+00 : f32
    %173 = vector.broadcast %cst_76 : f32 to vector<16x128xf32>
    %174 = arith.select %172, %132, %173 : vector<16x128xi1>, vector<16x128xf32>
    %175 = arith.addf %167, %174 : vector<16x128xf32>
    %176 = arith.subf %134, %149 : vector<16x128xf32>
    %177 = math.exp %176 : vector<16x128xf32>
    %178 = arith.addf %170, %177 : vector<16x128xf32>
    %cst_77 = arith.constant 3.000000e+00 : f32
    %179 = vector.broadcast %cst_77 : f32 to vector<16x128xf32>
    %180 = arith.cmpf oeq, %126, %179 : vector<16x128xf32>
    %cst_78 = arith.constant 0.000000e+00 : f32
    %181 = vector.broadcast %cst_78 : f32 to vector<16x128xf32>
    %182 = arith.select %180, %134, %181 : vector<16x128xi1>, vector<16x128xf32>
    %183 = arith.addf %175, %182 : vector<16x128xf32>
    %184 = arith.subf %136, %149 : vector<16x128xf32>
    %185 = math.exp %184 : vector<16x128xf32>
    %186 = arith.addf %178, %185 : vector<16x128xf32>
    %cst_79 = arith.constant 4.000000e+00 : f32
    %187 = vector.broadcast %cst_79 : f32 to vector<16x128xf32>
    %188 = arith.cmpf oeq, %126, %187 : vector<16x128xf32>
    %cst_80 = arith.constant 0.000000e+00 : f32
    %189 = vector.broadcast %cst_80 : f32 to vector<16x128xf32>
    %190 = arith.select %188, %136, %189 : vector<16x128xi1>, vector<16x128xf32>
    %191 = arith.addf %183, %190 : vector<16x128xf32>
    %192 = arith.subf %138, %149 : vector<16x128xf32>
    %193 = math.exp %192 : vector<16x128xf32>
    %194 = arith.addf %186, %193 : vector<16x128xf32>
    %cst_81 = arith.constant 5.000000e+00 : f32
    %195 = vector.broadcast %cst_81 : f32 to vector<16x128xf32>
    %196 = arith.cmpf oeq, %126, %195 : vector<16x128xf32>
    %cst_82 = arith.constant 0.000000e+00 : f32
    %197 = vector.broadcast %cst_82 : f32 to vector<16x128xf32>
    %198 = arith.select %196, %138, %197 : vector<16x128xi1>, vector<16x128xf32>
    %199 = arith.addf %191, %198 : vector<16x128xf32>
    %200 = arith.subf %140, %149 : vector<16x128xf32>
    %201 = math.exp %200 : vector<16x128xf32>
    %202 = arith.addf %194, %201 : vector<16x128xf32>
    %cst_83 = arith.constant 6.000000e+00 : f32
    %203 = vector.broadcast %cst_83 : f32 to vector<16x128xf32>
    %204 = arith.cmpf oeq, %126, %203 : vector<16x128xf32>
    %cst_84 = arith.constant 0.000000e+00 : f32
    %205 = vector.broadcast %cst_84 : f32 to vector<16x128xf32>
    %206 = arith.select %204, %140, %205 : vector<16x128xi1>, vector<16x128xf32>
    %207 = arith.addf %199, %206 : vector<16x128xf32>
    %208 = arith.subf %142, %149 : vector<16x128xf32>
    %209 = math.exp %208 : vector<16x128xf32>
    %210 = arith.addf %202, %209 : vector<16x128xf32>
    %cst_85 = arith.constant 7.000000e+00 : f32
    %211 = vector.broadcast %cst_85 : f32 to vector<16x128xf32>
    %212 = arith.cmpf oeq, %126, %211 : vector<16x128xf32>
    %cst_86 = arith.constant 0.000000e+00 : f32
    %213 = vector.broadcast %cst_86 : f32 to vector<16x128xf32>
    %214 = arith.select %212, %142, %213 : vector<16x128xi1>, vector<16x128xf32>
    %215 = arith.addf %207, %214 : vector<16x128xf32>
    %216 = math.log %210 : vector<16x128xf32>
    %217 = arith.addf %149, %216 : vector<16x128xf32>
    %218 = arith.subf %217, %215 : vector<16x128xf32>
    %cst_87 = arith.constant 0.000000e+00 : f32
    %219 = vector.broadcast %cst_87 : f32 to vector<16x128xf32>
    %cst_88 = arith.constant 1.000000e+00 : f32
    %220 = vector.broadcast %cst_88 : f32 to vector<16x128xf32>
    %221 = arith.select %12, %22, %219 : vector<16x128xi1>, vector<16x128xf32>
    %222 = vector.extract_strided_slice %221 {offsets = [0, 0], sizes = [8, 128], strides = [1, 1]} : vector<16x128xf32> to vector<8x128xf32>
    %223 = vector.extract_strided_slice %221 {offsets = [8, 0], sizes = [8, 128], strides = [1, 1]} : vector<16x128xf32> to vector<8x128xf32>
    %224 = arith.addf %222, %223 : vector<8x128xf32>
    %225 = arith.select %12, %220, %219 : vector<16x128xi1>, vector<16x128xf32>
    %226 = vector.extract_strided_slice %225 {offsets = [0, 0], sizes = [8, 128], strides = [1, 1]} : vector<16x128xf32> to vector<8x128xf32>
    %227 = vector.extract_strided_slice %225 {offsets = [8, 0], sizes = [8, 128], strides = [1, 1]} : vector<16x128xf32> to vector<8x128xf32>
    %228 = arith.addf %226, %227 : vector<8x128xf32>
    %229 = arith.select %10, %107, %219 : vector<16x128xi1>, vector<16x128xf32>
    %230 = vector.extract_strided_slice %229 {offsets = [0, 0], sizes = [8, 128], strides = [1, 1]} : vector<16x128xf32> to vector<8x128xf32>
    %231 = vector.extract_strided_slice %229 {offsets = [8, 0], sizes = [8, 128], strides = [1, 1]} : vector<16x128xf32> to vector<8x128xf32>
    %232 = arith.addf %230, %231 : vector<8x128xf32>
    %233 = arith.select %10, %220, %219 : vector<16x128xi1>, vector<16x128xf32>
    %234 = vector.extract_strided_slice %233 {offsets = [0, 0], sizes = [8, 128], strides = [1, 1]} : vector<16x128xf32> to vector<8x128xf32>
    %235 = vector.extract_strided_slice %233 {offsets = [8, 0], sizes = [8, 128], strides = [1, 1]} : vector<16x128xf32> to vector<8x128xf32>
    %236 = arith.addf %234, %235 : vector<8x128xf32>
    %237 = arith.select %10, %124, %219 : vector<16x128xi1>, vector<16x128xf32>
    %238 = vector.extract_strided_slice %237 {offsets = [0, 0], sizes = [8, 128], strides = [1, 1]} : vector<16x128xf32> to vector<8x128xf32>
    %239 = vector.extract_strided_slice %237 {offsets = [8, 0], sizes = [8, 128], strides = [1, 1]} : vector<16x128xf32> to vector<8x128xf32>
    %240 = arith.addf %238, %239 : vector<8x128xf32>
    %241 = arith.select %10, %218, %219 : vector<16x128xi1>, vector<16x128xf32>
    %242 = vector.extract_strided_slice %241 {offsets = [0, 0], sizes = [8, 128], strides = [1, 1]} : vector<16x128xf32> to vector<8x128xf32>
    %243 = vector.extract_strided_slice %241 {offsets = [8, 0], sizes = [8, 128], strides = [1, 1]} : vector<16x128xf32> to vector<8x128xf32>
    %244 = arith.addf %242, %243 : vector<8x128xf32>
    %c48_i32 = arith.constant 48 : i32
    %245 = arith.muli %3, %c48_i32 : i32
    %c0_i32_89 = arith.constant 0 : i32
    %246 = arith.addi %245, %c0_i32_89 : i32
    %247 = tpu.assume_multiple %246, 8 : i32
    %c0_90 = arith.constant 0 : index
    %248 = arith.index_cast %247 : i32 to index
    %c0_91 = arith.constant 0 : index
    %249 = vector.load %arg5[%c0_90, %248, %c0_91] : memref<1x96x128xf32, #tpu.memory_space<vmem>>, vector<1x8x128xf32>
    %250 = vector.shape_cast %249 : vector<1x8x128xf32> to vector<8x128xf32>
    %251 = arith.addf %250, %224 : vector<8x128xf32>
    %c0_92 = arith.constant 0 : index
    %252 = arith.index_cast %247 : i32 to index
    %c0_93 = arith.constant 0 : index
    %253 = vector.load %arg5[%c0_92, %252, %c0_93] : memref<1x96x128xf32, #tpu.memory_space<vmem>>, vector<1x8x128xf32>
    %254 = vector.shape_cast %253 : vector<1x8x128xf32> to vector<8x128xf32>
    %255 = vector.shape_cast %251 : vector<8x128xf32> to vector<1x8x128xf32>
    tpu.vector_store %arg5[%c0_92, %252, %c0_93], %255 {strides = array<i32>} : memref<1x96x128xf32, #tpu.memory_space<vmem>>, vector<1x8x128xf32>,
    %c8_i32 = arith.constant 8 : i32
    %256 = arith.addi %245, %c8_i32 : i32
    %257 = tpu.assume_multiple %256, 8 : i32
    %c0_94 = arith.constant 0 : index
    %258 = arith.index_cast %257 : i32 to index
    %c0_95 = arith.constant 0 : index
    %259 = vector.load %arg5[%c0_94, %258, %c0_95] : memref<1x96x128xf32, #tpu.memory_space<vmem>>, vector<1x8x128xf32>
    %260 = vector.shape_cast %259 : vector<1x8x128xf32> to vector<8x128xf32>
    %261 = arith.addf %260, %228 : vector<8x128xf32>
    %c0_96 = arith.constant 0 : index
    %262 = arith.index_cast %257 : i32 to index
    %c0_97 = arith.constant 0 : index
    %263 = vector.load %arg5[%c0_96, %262, %c0_97] : memref<1x96x128xf32, #tpu.memory_space<vmem>>, vector<1x8x128xf32>
    %264 = vector.shape_cast %263 : vector<1x8x128xf32> to vector<8x128xf32>
    %265 = vector.shape_cast %261 : vector<8x128xf32> to vector<1x8x128xf32>
    tpu.vector_store %arg5[%c0_96, %262, %c0_97], %265 {strides = array<i32>} : memref<1x96x128xf32, #tpu.memory_space<vmem>>, vector<1x8x128xf32>,
    %c16_i32 = arith.constant 16 : i32
    %266 = arith.addi %245, %c16_i32 : i32
    %267 = tpu.assume_multiple %266, 8 : i32
    %c0_98 = arith.constant 0 : index
    %268 = arith.index_cast %267 : i32 to index
    %c0_99 = arith.constant 0 : index
    %269 = vector.load %arg5[%c0_98, %268, %c0_99] : memref<1x96x128xf32, #tpu.memory_space<vmem>>, vector<1x8x128xf32>
    %270 = vector.shape_cast %269 : vector<1x8x128xf32> to vector<8x128xf32>
    %271 = arith.addf %270, %232 : vector<8x128xf32>
    %c0_100 = arith.constant 0 : index
    %272 = arith.index_cast %267 : i32 to index
    %c0_101 = arith.constant 0 : index
    %273 = vector.load %arg5[%c0_100, %272, %c0_101] : memref<1x96x128xf32, #tpu.memory_space<vmem>>, vector<1x8x128xf32>
    %274 = vector.shape_cast %273 : vector<1x8x128xf32> to vector<8x128xf32>
    %275 = vector.shape_cast %271 : vector<8x128xf32> to vector<1x8x128xf32>
    tpu.vector_store %arg5[%c0_100, %272, %c0_101], %275 {strides = array<i32>} : memref<1x96x128xf32, #tpu.memory_space<vmem>>, vector<1x8x128xf32>,
    %c24_i32 = arith.constant 24 : i32
    %276 = arith.addi %245, %c24_i32 : i32
    %277 = tpu.assume_multiple %276, 8 : i32
    %c0_102 = arith.constant 0 : index
    %278 = arith.index_cast %277 : i32 to index
    %c0_103 = arith.constant 0 : index
    %279 = vector.load %arg5[%c0_102, %278, %c0_103] : memref<1x96x128xf32, #tpu.memory_space<vmem>>, vector<1x8x128xf32>
    %280 = vector.shape_cast %279 : vector<1x8x128xf32> to vector<8x128xf32>
    %281 = arith.addf %280, %236 : vector<8x128xf32>
    %c0_104 = arith.constant 0 : index
    %282 = arith.index_cast %277 : i32 to index
    %c0_105 = arith.constant 0 : index
    %283 = vector.load %arg5[%c0_104, %282, %c0_105] : memref<1x96x128xf32, #tpu.memory_space<vmem>>, vector<1x8x128xf32>
    %284 = vector.shape_cast %283 : vector<1x8x128xf32> to vector<8x128xf32>
    %285 = vector.shape_cast %281 : vector<8x128xf32> to vector<1x8x128xf32>
    tpu.vector_store %arg5[%c0_104, %282, %c0_105], %285 {strides = array<i32>} : memref<1x96x128xf32, #tpu.memory_space<vmem>>, vector<1x8x128xf32>,
    %c32_i32 = arith.constant 32 : i32
    %286 = arith.addi %245, %c32_i32 : i32
    %287 = tpu.assume_multiple %286, 8 : i32
    %c0_106 = arith.constant 0 : index
    %288 = arith.index_cast %287 : i32 to index
    %c0_107 = arith.constant 0 : index
    %289 = vector.load %arg5[%c0_106, %288, %c0_107] : memref<1x96x128xf32, #tpu.memory_space<vmem>>, vector<1x8x128xf32>
    %290 = vector.shape_cast %289 : vector<1x8x128xf32> to vector<8x128xf32>
    %291 = arith.addf %290, %240 : vector<8x128xf32>
    %c0_108 = arith.constant 0 : index
    %292 = arith.index_cast %287 : i32 to index
    %c0_109 = arith.constant 0 : index
    %293 = vector.load %arg5[%c0_108, %292, %c0_109] : memref<1x96x128xf32, #tpu.memory_space<vmem>>, vector<1x8x128xf32>
    %294 = vector.shape_cast %293 : vector<1x8x128xf32> to vector<8x128xf32>
    %295 = vector.shape_cast %291 : vector<8x128xf32> to vector<1x8x128xf32>
    tpu.vector_store %arg5[%c0_108, %292, %c0_109], %295 {strides = array<i32>} : memref<1x96x128xf32, #tpu.memory_space<vmem>>, vector<1x8x128xf32>,
    %c40_i32 = arith.constant 40 : i32
    %296 = arith.addi %245, %c40_i32 : i32
    %297 = tpu.assume_multiple %296, 8 : i32
    %c0_110 = arith.constant 0 : index
    %298 = arith.index_cast %297 : i32 to index
    %c0_111 = arith.constant 0 : index
    %299 = vector.load %arg5[%c0_110, %298, %c0_111] : memref<1x96x128xf32, #tpu.memory_space<vmem>>, vector<1x8x128xf32>
    %300 = vector.shape_cast %299 : vector<1x8x128xf32> to vector<8x128xf32>
    %301 = arith.addf %300, %244 : vector<8x128xf32>
    %c0_112 = arith.constant 0 : index
    %302 = arith.index_cast %297 : i32 to index
    %c0_113 = arith.constant 0 : index
    %303 = vector.load %arg5[%c0_112, %302, %c0_113] : memref<1x96x128xf32, #tpu.memory_space<vmem>>, vector<1x8x128xf32>
    %304 = vector.shape_cast %303 : vector<1x8x128xf32> to vector<8x128xf32>
    %305 = vector.shape_cast %301 : vector<8x128xf32> to vector<1x8x128xf32>
    tpu.vector_store %arg5[%c0_112, %302, %c0_113], %305 {strides = array<i32>} : memref<1x96x128xf32, #tpu.memory_space<vmem>>, vector<1x8x128xf32>,
    return
  }
  func.func @transform_0(%arg0: i32, %arg1: i32, %arg2: memref<2xi32, #tpu.memory_space<smem>>) -> (i32, i32, i32) {
    %c1_i32 = arith.constant 1 : i32
    %0 = arith.muli %arg0, %c1_i32 : i32
    %1 = arith.addi %0, %arg1 : i32
    %c0_i32 = arith.constant 0 : i32
    %c0_i32_0 = arith.constant 0 : i32
    %c0_i32_1 = arith.constant 0 : i32
    return %c0_i32, %1, %c0_i32_0 : i32, i32, i32
  }
  func.func @transform_1(%arg0: i32, %arg1: i32, %arg2: memref<2xi32, #tpu.memory_space<smem>>) -> (i32, i32, i32) {
    %c1_i32 = arith.constant 1 : i32
    %0 = arith.muli %arg0, %c1_i32 : i32
    %1 = arith.addi %0, %arg1 : i32
    %c0_i32 = arith.constant 0 : i32
    %c0_i32_0 = arith.constant 0 : i32
    %c0_i32_1 = arith.constant 0 : i32
    return %c0_i32, %1, %c0_i32_0 : i32, i32, i32
  }
  func.func @transform_2(%arg0: i32, %arg1: i32, %arg2: memref<2xi32, #tpu.memory_space<smem>>) -> (i32, i32, i32) {
    %c0_i32 = arith.constant 0 : i32
    %c0_i32_0 = arith.constant 0 : i32
    %c0_i32_1 = arith.constant 0 : i32
    return %arg0, %c0_i32, %c0_i32_0 : i32, i32, i32
  }
}

</mosaic_0001>

<llo_original>
// kernel: tpu_custom_call.1
$region0: #{tpu_custom_call.1}
  #allocation0 [shape = 'u32[]', space=smem, size = 0x4, offset = 0x4, fixed_abs, tag = 'smem constant byte address 0x4 - core index']
  #allocation1 [shape = 'u32[144,128]{1,0:T(1,128)}', space=vmem, size = 0x12000, scoped, tag = 'internal scratch']
  #allocation2 [shape = 's32[1]{0}', space=sflag, size = 0x4, scoped, tag = 'scoped memory for tpu_custom_call.1']
  #allocation3 [shape = 'u8[512]{0}', space=smem, size = 0x200, scoped, tag = 'prefetched SMEM operand 0']
  #allocation10 [shape = 's32[]', space=sflag, size = 0x4, offset = 0, fixed_abs, tag = 'sflag constant byte address 0x0 - dummy sync flag']
  #allocation12 [shape = 's32[]', space=sflag, size = 0x4, offset = 0, fixed_abs, tag = 'sflag constant byte address 0x0 - dummy sync flag']
  %s0 = inlined_call_operand.hbm [shape: s32[2], index: 0, kind: input, shape index: {}]
  %s1 = inlined_call_operand.hbm [shape: f32[13,32,128], index: 1, kind: input, shape index: {}]
  %s2 = inlined_call_operand.hbm [shape: f32[6,32,128], index: 2, kind: input, shape index: {}]
  %s3 = inlined_call_operand.hbm [shape: f32[2,96,128], index: 3, kind: output, shape index: {}]
  %s4 = sld [smem:[#allocation0]]
  $region53: #{tpu_custom_call.1} parent=0
    _
  %s6 = ssub.s32 1, %s4
  %s7 = scalar_select 0, %s6, %s4
  %9 = dma.hbm_to_smem %s0, 16, [#allocation3], [#allocation2]
  %10 = dma.done [#allocation2], 16
  %11 = sfence
  $region1: #{tpu_custom_call.1} parent=0
    #allocation4 [shape = 'u8[212992]{0}', space=vmem, size = 0x34000, scoped, tag = 'input window, operand 1']
    #allocation5 [shape = 's32[2]{0}', space=sflag, size = 0x8, scoped, tag = 'scoped memory for tpu_custom_call.1']
    #allocation6 [shape = 's32[2]{0}', space=sflag, size = 0x8, scoped, tag = 'scoped memory for tpu_custom_call.1']
    #allocation7 [shape = 'u8[98304]{0}', space=vmem, size = 0x18000, scoped, tag = 'input window, operand 2']
    #allocation8 [shape = 's32[2]{0}', space=sflag, size = 0x8, scoped, tag = 'scoped memory for tpu_custom_call.1']
    #allocation9 [shape = 'u8[98304]{0}', space=vmem, size = 0x18000, scoped, tag = 'output window, operand 0']
    %12 = vsyncpa [#allocation5], 0
    %s13 = scalar_lea.sflag [#allocation5], 1
    %14 = vsyncpa %s13, 0
    %15 = vsyncpa [#allocation8], 0
    %s16 = scalar_lea.sflag [#allocation8], 1
    %17 = vsyncpa %s16, 0
    %18 = vsyncpa [#allocation6], 0
    %s19 = scalar_lea.sflag [#allocation6], 1
    %20 = vsyncpa %s19, 0
    loop: start=0, step=1, limit=4
    $region2: #{tpu_custom_call.1} parent=1 // loop_pre_header
      _
    $region3: #{tpu_custom_call.1} parent=1 // loop_header
      %s22 = sphi 0, %s26
      %p23 = scmp.ge.s32.totalorder %s22, 4
      %s29 = sphi 0, %s41
      %s30 = sphi 0, %s37
      %s31 = sphi 0, %s29
      %s32 = sphi 0, %s30
      %s33 = sphi 0, %s31
      %s34 = sphi 0, %s32
      %s46 = sphi 0, %s48
      %s49 = sphi 0, %s46
      %s50 = sphi 0, %s49
      %s66 = sphi 0, %s50
      %s74 = sphi 0, %s76
      %s77 = sphi 0, %s74
      %s78 = sphi 0, %s77
      %s94 = sphi 0, %s78
      %s100 = sphi 0, %s102
      %s103 = sphi 0, %s100
      %s104 = sphi 0, %s103
      %s120 = sphi 0, %s104
    $region4: #{tpu_custom_call.1} parent=1 // loop_header_branch
      %25 = sbr.rel (%p23) target = $region8
    $region5: #{tpu_custom_call.1} parent=1 // loop_body
      %s27 = ssub.s32 %s22, 1
      %s28 = ssub.s32 %s22, 2
      %s35 = sadd.s32 1, %s30
      %p36 = scmp.ge.s32.totalorder %s35, 1
      %s37 = scalar_select %p36, 0, %s35
      %s38 = sadd.s32 1, %s29
      %s39 = scalar_select %p36, %s38, %s29
      %p40 = scmp.ge.s32.totalorder %s39, 2
      %s41 = scalar_select %p40, 0, %s39
      %s42 = sadd.s32 %s29, %s30
      %s43 = sadd.s32 %s41, %s37
      %s44 = ssub.s32 %s42, %s43
      %p45 = scmp.eq.s32.totalorder %s44, 0
      %s47 = sadd.s32 %s46, 1
      %s48 = scalar_select %p45, %s46, %s47
      %p51 = pneg %p45
      %p52 = scmp.eq.s32.totalorder %s22, 1
      %p53 = por %p51, %p52
      %p54 = scmp.ne.s32.totalorder %s46, %s49
      %p55 = scmp.eq.s32.totalorder %s22, 0
      %p56 = por %p54, %p55
      %p57 = scmp.ne.s32.totalorder %s46, %s49
      %p58 = scmp.eq.s32.totalorder %s27, 1
      %p59 = por %p57, %p58
      %p60 = scmp.ne.s32.totalorder %s49, %s50
      %p61 = scmp.eq.s32.totalorder %s27, 0
      %p62 = por %p60, %p61
      %p63 = scmp.ne.s32.totalorder %s49, %s50
      %p64 = scmp.eq.s32.totalorder %s28, 1
      %p65 = por %p63, %p64
      %p67 = scmp.ne.s32.totalorder %s50, %s66
      %p68 = scmp.eq.s32.totalorder %s28, 0
      %p69 = por %p67, %p68
      %s70 = sadd.s32 %s29, %s30
      %s71 = sadd.s32 %s41, %s37
      %s72 = ssub.s32 %s70, %s71
      %p73 = scmp.eq.s32.totalorder %s72, 0
      %s75 = sadd.s32 %s74, 1
      %s76 = scalar_select %p73, %s74, %s75
      %p79 = pneg %p73
      %p80 = scmp.eq.s32.totalorder %s22, 1
      %p81 = por %p79, %p80
      %p82 = scmp.ne.s32.totalorder %s74, %s77
      %p83 = scmp.eq.s32.totalorder %s22, 0
      %p84 = por %p82, %p83
      %p85 = scmp.ne.s32.totalorder %s74, %s77
      %p86 = scmp.eq.s32.totalorder %s27, 1
      %p87 = por %p85, %p86
      %p88 = scmp.ne.s32.totalorder %s77, %s78
      %p89 = scmp.eq.s32.totalorder %s27, 0
      %p90 = por %p88, %p89
      %p91 = scmp.ne.s32.totalorder %s77, %s78
      %p92 = scmp.eq.s32.totalorder %s28, 1
      %p93 = por %p91, %p92
      %p95 = scmp.ne.s32.totalorder %s78, %s94
      %p96 = scmp.eq.s32.totalorder %s28, 0
      %p97 = por %p95, %p96
      %s98 = ssub.s32 %s29, %s41
      %p99 = scmp.eq.s32.totalorder %s98, 0
      %s101 = sadd.s32 %s100, 1
      %s102 = scalar_select %p99, %s100, %s101
      %p105 = pneg %p99
      %p106 = scmp.eq.s32.totalorder %s22, 1
      %p107 = por %p105, %p106
      %p108 = scmp.ne.s32.totalorder %s100, %s103
      %p109 = scmp.eq.s32.totalorder %s22, 0
      %p110 = por %p108, %p109
      %p111 = scmp.ne.s32.totalorder %s100, %s103
      %p112 = scmp.eq.s32.totalorder %s27, 1
      %p113 = por %p111, %p112
      %p114 = scmp.ne.s32.totalorder %s103, %s104
      %p115 = scmp.eq.s32.totalorder %s27, 0
      %p116 = por %p114, %p115
      %p117 = scmp.ne.s32.totalorder %s103, %s104
      %p118 = scmp.eq.s32.totalorder %s28, 1
      %p119 = por %p117, %p118
      %p121 = scmp.ne.s32.totalorder %s104, %s120
      %p122 = scmp.eq.s32.totalorder %s28, 0
      %p123 = por %p121, %p122
      %p124 = scmp.le.s32.totalorder 1, %s22
      %p125 = scmp.lt.s32.totalorder %s22, 3
      %p126 = pnand %p124, %p125
      %p127 = pneg %p126
      // Predicated region
      $region9: #{tpu_custom_call.1} parent=5 // pred_check
        _
      $region10: #{tpu_custom_call.1} parent=5 // pred_check_branch
        %129 = sbr.rel (%p126) target = $region12
      $region11: #{tpu_custom_call.1} parent=5 // pred_region
        %s130 = ssub.s32 %s22, 1
      $region12: #{tpu_custom_call.1} parent=5 // pred_fallthru
        _
      %p131 = scmp.lt.s32.totalorder %s22, 2
      // Predicated region
      $region13: #{tpu_custom_call.1} parent=5 // pred_check
        %p132 = pneg %p131
      $region14: #{tpu_custom_call.1} parent=5 // pred_check_branch
        %134 = sbr.rel (%p132) target = $region16
      $region15: #{tpu_custom_call.1} parent=5 // pred_region
        // Predicated region
        $region17: #{tpu_custom_call.1} parent=15 // pred_check
          %p135 = pneg %p56
        $region18: #{tpu_custom_call.1} parent=15 // pred_check_branch
          %137 = sbr.rel (%p135) target = $region20
        $region19: #{tpu_custom_call.1} parent=15 // pred_region
          #allocation11 [shape = 'u32[6]{0}', space=smem, size = 0x18, scoped, tag = 'DMA stride descriptor']
          %s138 = sand.u32 %s46, 1
          %s139 = scalar_lea.sflag [#allocation5], %s138
          %s140 = sand.u32 %s46, 1
          %s141 = smul.addr %s140, 208
          %s142 = scalar_lea.vmem [#allocation4], %s141
          %s143 = sadd.s32 %s29, %s30
          %s144 = smul.u32 2, %s143
          %s146 = ssub.s32 3328, 3328
          %147 = vsyncadd %s139, %s146
          %s148 = smul.addr %s144, 128
          %s149 = scalar_lea.hbm %s1, %s148
          %s151 = sshll.u32 1, 14
          %s152 = sxor.u32 4294967295, %s151
          %s154 = sld [smem:[#allocation0]]
          %s155 = sadd.s32 2, %s154
          %s157 = sshll.u32 7, 26
          %s158 = sxor.u32 4294967295, %s157
          %s159 = sand.u32 0, %s158
          %s160 = sshll.u32 %s155, 26
          %s161 = sor.u32 %s159, %s160
          %s162 = sshll.u32 %s142, 4
          %s163 = int_to_ptr.vmem [resolvable:$true] %s162
          %169 = sst [smem:[#allocation11]] 512
          %s170 = scalar_lea.smem [#allocation11], 1
          %171 = sst [smem:[%s170]] 256
          %s172 = scalar_lea.smem [#allocation11], 2
          %173 = sst [smem:[%s172]] 2
          %s174 = scalar_lea.smem [#allocation11], 3
          %175 = sst [smem:[%s174]] 128
          %s176 = scalar_lea.smem [#allocation11], 4
          %177 = sst [smem:[%s176]] 128
          %s178 = scalar_lea.smem [#allocation11], 5
          %179 = sst [smem:[%s178]] 8
          %181 = dma.general %s149, 3328, %s163, %s139, [#allocation10], [#allocation11], %s161, 0
        $region20: #{tpu_custom_call.1} parent=15 // pred_fallthru
          _
        // Predicated region
        $region21: #{tpu_custom_call.1} parent=15 // pred_check
          %p182 = pneg %p84
        $region22: #{tpu_custom_call.1} parent=15 // pred_check_branch
          %184 = sbr.rel (%p182) target = $region24
        $region23: #{tpu_custom_call.1} parent=15 // pred_region
          #allocation13 [shape = 'u32[6]{0}', space=smem, size = 0x18, scoped, tag = 'DMA stride descriptor']
          %s185 = sand.u32 %s74, 1
          %s186 = scalar_lea.sflag [#allocation8], %s185
          %s187 = sand.u32 %s74, 1
          %s188 = smul.addr %s187, 96
          %s189 = scalar_lea.vmem [#allocation7], %s188
          %s190 = sadd.s32 %s29, %s30
          %s191 = smul.u32 2, %s190
          %s193 = ssub.s32 1536, 1536
          %194 = vsyncadd %s186, %s193
          %s195 = smul.addr %s191, 128
          %s196 = scalar_lea.hbm %s2, %s195
          %s198 = sshll.u32 1, 14
          %s199 = sxor.u32 4294967295, %s198
          %s201 = sld [smem:[#allocation0]]
          %s202 = sadd.s32 2, %s201
          %s204 = sshll.u32 7, 26
          %s205 = sxor.u32 4294967295, %s204
          %s206 = sand.u32 0, %s205
          %s207 = sshll.u32 %s202, 26
          %s208 = sor.u32 %s206, %s207
          %s209 = sshll.u32 %s189, 4
          %s210 = int_to_ptr.vmem [resolvable:$true] %s209
          %216 = sst [smem:[#allocation13]] 512
          %s217 = scalar_lea.smem [#allocation13], 1
          %218 = sst [smem:[%s217]] 256
          %s219 = scalar_lea.smem [#allocation13], 2
          %220 = sst [smem:[%s219]] 2
          %s221 = scalar_lea.smem [#allocation13], 3
          %222 = sst [smem:[%s221]] 128
          %s223 = scalar_lea.smem [#allocation13], 4
          %224 = sst [smem:[%s223]] 128
          %s225 = scalar_lea.smem [#allocation13], 5
          %226 = sst [smem:[%s225]] 8
          %228 = dma.general %s196, 1536, %s210, %s186, [#allocation12], [#allocation13], %s208, 0
        $region24: #{tpu_custom_call.1} parent=15 // pred_fallthru
          _
      $region16: #{tpu_custom_call.1} parent=5 // pred_fallthru
        _
      %p229 = scmp.le.s32.totalorder 1, %s22
      %p230 = scmp.lt.s32.totalorder %s22, 3
      %p231 = pnand %p229, %p230
      %p232 = pneg %p231
      // Predicated region
      $region25: #{tpu_custom_call.1} parent=5 // pred_check
        _
      $region26: #{tpu_custom_call.1} parent=5 // pred_check_branch
        %234 = sbr.rel (%p231) target = $region28
      $region27: #{tpu_custom_call.1} parent=5 // pred_region
        %s235 = ssub.s32 %s22, 1
        %s236 = sand.u32 %s49, 1
        %s237 = scalar_lea.sflag [#allocation5], %s236
        %s238 = sand.u32 %s49, 1
        %s239 = smul.addr %s238, 208
        %s240 = scalar_lea.vmem [#allocation4], %s239
        // Predicated region
        $region29: #{tpu_custom_call.1} parent=27 // pred_check
          %p241 = pneg %p62
        $region30: #{tpu_custom_call.1} parent=27 // pred_check_branch
          %243 = sbr.rel (%p241) target = $region32
        $region31: #{tpu_custom_call.1} parent=27 // pred_region
          %244 = dma.done %s237, 3328
        $region32: #{tpu_custom_call.1} parent=27 // pred_fallthru
          _
        %s245 = sand.u32 %s77, 1
        %s246 = scalar_lea.sflag [#allocation8], %s245
        %s247 = sand.u32 %s77, 1
        %s248 = smul.addr %s247, 96
        %s249 = scalar_lea.vmem [#allocation7], %s248
        // Predicated region
        $region33: #{tpu_custom_call.1} parent=27 // pred_check
          %p250 = pneg %p90
        $region34: #{tpu_custom_call.1} parent=27 // pred_check_branch
          %252 = sbr.rel (%p250) target = $region36
        $region35: #{tpu_custom_call.1} parent=27 // pred_region
          %253 = dma.done %s246, 1536
        $region36: #{tpu_custom_call.1} parent=27 // pred_fallthru
          _
        %s254 = sand.u32 %s49, 1
        %s255 = scalar_lea.sflag [#allocation5], %s254
        %s256 = sand.u32 %s49, 1
        %s257 = smul.addr %s256, 208
        %s258 = scalar_lea.vmem [#allocation4], %s257
        %p259 = pneg %p62
        %p260 = pneg %p59
        %s261 = sand.u32 %s77, 1
        %s262 = scalar_lea.sflag [#allocation8], %s261
        %s263 = sand.u32 %s77, 1
        %s264 = smul.addr %s263, 96
        %s265 = scalar_lea.vmem [#allocation7], %s264
        %p266 = pneg %p90
        %p267 = pneg %p87
        %p268 = pneg %p116
        %p269 = pneg %p113
        %s270 = sand.u32 %s103, 1
        %s271 = scalar_lea.sflag [#allocation6], %s270
        %s272 = sand.u32 %s103, 1
        %s273 = smul.addr %s272, 96
        %s274 = scalar_lea.vmem [#allocation9], %s273
        %s275 = sadd.s32 %s31, %s32
        %s276 = smul.u32 2, %s275
        %s277 = sadd.s32 %s31, %s32
        %s278 = smul.u32 2, %s277
        %s279 = sadd.s32 %s31, %s32
        %s280 = sld [smem:[#allocation3 + %s279]]
        %p281 = scmp.eq.s32.totalorder %s32, 0
        // Predicated region
        $region37: #{tpu_custom_call.1} parent=27 // pred_check
          %p282 = pneg %p281
        $region38: #{tpu_custom_call.1} parent=27 // pred_check_branch
          %284 = sbr.rel (%p282) target = $region40
        $region39: #{tpu_custom_call.1} parent=27 // pred_region
          %285 = vst [vmem:[%s274] sm:$0xff] 0.0
          %286 = vst [vmem:[%s274 + $0x8] sm:$0xff] 0.0
          %287 = vst [vmem:[%s274 + $0x10] sm:$0xff] 0.0
          %288 = vst [vmem:[%s274 + $0x18] sm:$0xff] 0.0
          %289 = vst [vmem:[%s274 + $0x20] sm:$0xff] 0.0
          %290 = vst [vmem:[%s274 + $0x28] sm:$0xff] 0.0
          %291 = vst [vmem:[%s274 + $0x30] sm:$0xff] 0.0
          %292 = vst [vmem:[%s274 + $0x38] sm:$0xff] 0.0
          %293 = vst [vmem:[%s274 + $0x40] sm:$0xff] 0.0
          %294 = vst [vmem:[%s274 + $0x48] sm:$0xff] 0.0
          %295 = vst [vmem:[%s274 + $0x50] sm:$0xff] 0.0
          %296 = vst [vmem:[%s274 + $0x58] sm:$0xff] 0.0
        $region40: #{tpu_custom_call.1} parent=27 // pred_fallthru
          _
        %v297 = vld [vmem:[%s249] sm:$0xff]
        %v298 = vld [vmem:[%s249 + $0x8] sm:$0xff]
        %vm299 = vcmp.eq.f32.partialorder %v297, 1.0
        %vm300 = vcmp.eq.f32.partialorder %v298, 1.0
        %vm301 = vcmp.eq.f32.partialorder %v297, 0.0
        %vm302 = vcmp.eq.f32.partialorder %v298, 0.0
        %v303 = vld [vmem:[%s240] sm:$0xff]
        %v304 = vld [vmem:[%s240 + $0x8] sm:$0xff]
        %v305 = vand.u32 2147483647, %v303
        %v306 = vand.u32 2147483647, %v304
        %v307 = vsub.f32 0.0, %v305
        %v308 = vsub.f32 0.0, %v306
        %v309 = vmul.f32 %v307, 1.442695
        %v310 = vpow.pop %v309
        %v311 = vmul.f32 %v308, 1.442695
        %v312 = vpow.pop %v311
        %v313 = vmax.f32 %v303, 0.0
        %v314 = vmax.f32 %v304, 0.0
        %v315 = vadd.f32 %v310, 1.0
        %v316 = vlog2.pop %v315
        %v317 = vmul.f32 %v316, 0.6931472
        %v318 = vmul.f32 -0.5, %v310
        %v319 = vadd.f32 %v318, 1.0
        %v320 = vmul.f32 %v319, %v310
        %v321 = vand.u32 2147483647, %v310
        %vm322 = vcmp.lt.f32.partialorder %v321, 0.0004427343
        %v323 = vsel %vm322, %v320, %v317
        %v324 = vadd.f32 %v312, 1.0
        %v325 = vlog2.pop %v324
        %v326 = vmul.f32 %v325, 0.6931472
        %v327 = vmul.f32 -0.5, %v312
        %v328 = vadd.f32 %v327, 1.0
        %v329 = vmul.f32 %v328, %v312
        %v330 = vand.u32 2147483647, %v312
        %vm331 = vcmp.lt.f32.partialorder %v330, 0.0004427343
        %v332 = vsel %vm331, %v329, %v326
        %v333 = vadd.f32 %v313, %v323
        %v334 = vadd.f32 %v314, %v332
        %v335 = vadd.f32 %v310, 1.0
        %v336 = vadd.f32 %v312, 1.0
        %v337 = vrcp.pop %v335
        %v338 = vrcp.pop %v336
        %vm339 = vcmp.ge.f32.partialorder %v303, 0.0
        %vm340 = vcmp.ge.f32.partialorder %v304, 0.0
        %v341 = vmul.f32 %v310, %v337
        %v342 = vmul.f32 %v312, %v338
        %v343 = vsel %vm339, %v337, %v341
        %v344 = vsel %vm340, %v338, %v342
        %s345 = scalar_lea.vmem %s240, 16 [#allocation4]
        %v346 = vld [vmem:[%s345] sm:$0xff]
        %v347 = vld [vmem:[%s345 + $0x8] sm:$0xff]
        %v348 = vmul.f32 %v346, 0.5
        %v349 = vmul.f32 %v347, 0.5
        %v350 = vtanh.pop %v348
        %v351 = vtanh.pop %v349
        %v352 = vmul.f32 %v350, 0.5
        %v353 = vmul.f32 %v351, 0.5
        %v354 = vadd.f32 %v352, 0.5
        %v355 = vadd.f32 %v353, 0.5
        %s356 = scalar_lea.vmem %s240, 32 [#allocation4]
        %v357 = vld [vmem:[%s356] sm:$0xff]
        %v358 = vld [vmem:[%s356 + $0x8] sm:$0xff]
        %v359 = vmul.f32 %v357, 0.5
        %v360 = vmul.f32 %v358, 0.5
        %v361 = vtanh.pop %v359
        %v362 = vtanh.pop %v360
        %v363 = vmul.f32 %v361, 0.5
        %v364 = vmul.f32 %v362, 0.5
        %v365 = vadd.f32 %v363, 0.5
        %v366 = vadd.f32 %v364, 0.5
        %s367 = scalar_lea.vmem %s240, 48 [#allocation4]
        %v368 = vld [vmem:[%s367] sm:$0xff]
        %v369 = vld [vmem:[%s367 + $0x8] sm:$0xff]
        %s370 = scalar_lea.vmem %s240, 64 [#allocation4]
        %v371 = vld [vmem:[%s370] sm:$0xff]
        %v372 = vld [vmem:[%s370 + $0x8] sm:$0xff]
        %v373 = vmul.f32 %v368, 1.442695
        %v374 = vpow.pop %v373
        %v375 = vmul.f32 %v369, 1.442695
        %v376 = vpow.pop %v375
        %v377 = vmul.f32 %v371, 1.442695
        %v378 = vpow.pop %v377
        %v379 = vmul.f32 %v372, 1.442695
        %v380 = vpow.pop %v379
        %s381 = scalar_lea.vmem %s249, 16 [#allocation7]
        %v382 = vld [vmem:[%s381] sm:$0xff]
        %v383 = vld [vmem:[%s381 + $0x8] sm:$0xff]
        %s384 = scalar_lea.vmem %s249, 32 [#allocation7]
        %v385 = vld [vmem:[%s384] sm:$0xff]
        %v386 = vld [vmem:[%s384 + $0x8] sm:$0xff]
        %s387 = scalar_lea.vmem %s249, 48 [#allocation7]
        %v388 = vld [vmem:[%s387] sm:$0xff]
        %v389 = vld [vmem:[%s387 + $0x8] sm:$0xff]
        %s390 = scalar_lea.vmem %s249, 64 [#allocation7]
        %v391 = vld [vmem:[%s390] sm:$0xff]
        %v392 = vld [vmem:[%s390 + $0x8] sm:$0xff]
        %v393 = vmul.f32 %v374, 0.5
        %v394 = vmul.f32 %v376, 0.5
        %v395 = vadd.f32 %v354, %v393
        %v396 = vadd.f32 %v355, %v394
        %v397 = vmul.f32 %v388, 0.5
        %v398 = vmul.f32 %v389, 0.5
        %v399 = vadd.f32 %v382, %v397
        %v400 = vadd.f32 %v383, %v398
        %v401 = vmin.f32 %v395, %v399
        %v402 = vmin.f32 %v396, %v400
        %v403 = vsub.f32 %v354, %v393
        %v404 = vsub.f32 %v355, %v394
        %v405 = vsub.f32 %v382, %v397
        %v406 = vsub.f32 %v383, %v398
        %v407 = vmax.f32 %v403, %v405
        %v408 = vmax.f32 %v404, %v406
        %v409 = vsub.f32 %v401, %v407
        %v410 = vsub.f32 %v402, %v408
        %v411 = vmax.f32 %v409, 0.0
        %v412 = vmax.f32 %v410, 0.0
        %v413 = vmul.f32 %v378, 0.5
        %v414 = vmul.f32 %v380, 0.5
        %v415 = vadd.f32 %v365, %v413
        %v416 = vadd.f32 %v366, %v414
        %v417 = vmul.f32 %v391, 0.5
        %v418 = vmul.f32 %v392, 0.5
        %v419 = vadd.f32 %v385, %v417
        %v420 = vadd.f32 %v386, %v418
        %v421 = vmin.f32 %v415, %v419
        %v422 = vmin.f32 %v416, %v420
        %v423 = vsub.f32 %v365, %v413
        %v424 = vsub.f32 %v366, %v414
        %v425 = vsub.f32 %v385, %v417
        %v426 = vsub.f32 %v386, %v418
        %v427 = vmax.f32 %v423, %v425
        %v428 = vmax.f32 %v424, %v426
        %v429 = vsub.f32 %v421, %v427
        %v430 = vsub.f32 %v422, %v428
        %v431 = vmax.f32 %v429, 0.0
        %v432 = vmax.f32 %v430, 0.0
        %v433 = vmul.f32 %v411, %v431
        %v434 = vmul.f32 %v412, %v432
        %v435 = vmul.f32 %v374, %v378
        %v436 = vmul.f32 %v376, %v380
        %v437 = vmul.f32 %v388, %v391
        %v438 = vmul.f32 %v389, %v392
        %v439 = vadd.f32 %v435, %v437
        %v440 = vadd.f32 %v436, %v438
        %v441 = vsub.f32 %v439, %v433
        %v442 = vsub.f32 %v440, %v434
        %v443 = vadd.f32 %v441, 1e-06
        %v444 = vadd.f32 %v442, 1e-06
        %v445 = vrcp.pop %v443
        %v446 = vrcp.pop %v444
        %v447 = vmul.f32 %v433, %v445
        %v448 = vmul.f32 %v434, %v446
        %v449 = vmul.f32 %v447, %v297
        %v450 = vmul.f32 %v448, %v298
        %v451 = vsub.f32 %v343, %v449
        %v452 = vsub.f32 %v344, %v450
        %v453 = vmul.f32 %v451, %v451
        %v454 = vmul.f32 %v452, %v452
        %v455 = vsub.f32 %v354, %v382
        %v456 = vsub.f32 %v355, %v383
        %v457 = vsub.f32 %v365, %v385
        %v458 = vsub.f32 %v366, %v386
        %v459 = vadd.f32 %v388, 1e-16
        %v460 = vadd.f32 %v389, 1e-16
        %v461 = vlog2.pop %v459
        %v462 = vmul.f32 %v461, 0.6931472
        %v463 = vlog2.pop %v460
        %v464 = vmul.f32 %v463, 0.6931472
        %v465 = vsub.f32 %v368, %v462
        %v466 = vsub.f32 %v369, %v464
        %v467 = vadd.f32 %v391, 1e-16
        %v468 = vadd.f32 %v392, 1e-16
        %v469 = vlog2.pop %v467
        %v470 = vmul.f32 %v469, 0.6931472
        %v471 = vlog2.pop %v468
        %v472 = vmul.f32 %v471, 0.6931472
        %v473 = vsub.f32 %v371, %v470
        %v474 = vsub.f32 %v372, %v472
        %v475 = vmul.f32 %v455, %v455
        %v476 = vmul.f32 %v456, %v456
        %v477 = vmul.f32 %v457, %v457
        %v478 = vmul.f32 %v458, %v458
        %v479 = vadd.f32 %v475, %v477
        %v480 = vadd.f32 %v476, %v478
        %v481 = vmul.f32 %v465, %v465
        %v482 = vmul.f32 %v466, %v466
        %v483 = vadd.f32 %v479, %v481
        %v484 = vadd.f32 %v480, %v482
        %v485 = vmul.f32 %v473, %v473
        %v486 = vmul.f32 %v474, %v474
        %v487 = vadd.f32 %v483, %v485
        %v488 = vadd.f32 %v484, %v486
        %s489 = scalar_lea.vmem %s249, 80 [#allocation7]
        %v490 = vld [vmem:[%s489] sm:$0xff]
        %v491 = vld [vmem:[%s489 + $0x8] sm:$0xff]
        %s492 = scalar_lea.vmem %s240, 80 [#allocation4]
        %v493 = vld [vmem:[%s492] sm:$0xff]
        %v494 = vld [vmem:[%s492 + $0x8] sm:$0xff]
        %s495 = scalar_lea.vmem %s240, 96 [#allocation4]
        %v496 = vld [vmem:[%s495] sm:$0xff]
        %v497 = vld [vmem:[%s495 + $0x8] sm:$0xff]
        %s498 = scalar_lea.vmem %s240, 112 [#allocation4]
        %v499 = vld [vmem:[%s498] sm:$0xff]
        %v500 = vld [vmem:[%s498 + $0x8] sm:$0xff]
        %s501 = scalar_lea.vmem %s240, 128 [#allocation4]
        %v502 = vld [vmem:[%s501] sm:$0xff]
        %v503 = vld [vmem:[%s501 + $0x8] sm:$0xff]
        %s504 = scalar_lea.vmem %s240, 144 [#allocation4]
        %v505 = vld [vmem:[%s504] sm:$0xff]
        %v506 = vld [vmem:[%s504 + $0x8] sm:$0xff]
        %s507 = scalar_lea.vmem %s240, 160 [#allocation4]
        %v508 = vld [vmem:[%s507] sm:$0xff]
        %v509 = vld [vmem:[%s507 + $0x8] sm:$0xff]
        %s510 = scalar_lea.vmem %s240, 176 [#allocation4]
        %v511 = vld [vmem:[%s510] sm:$0xff]
        %v512 = vld [vmem:[%s510 + $0x8] sm:$0xff]
        %s513 = scalar_lea.vmem %s240, 192 [#allocation4]
        %v514 = vld [vmem:[%s513] sm:$0xff]
        %v515 = vld [vmem:[%s513 + $0x8] sm:$0xff]
        %v516 = vmax.f32 %v493, %v496
        %v517 = vmax.f32 %v494, %v497
        %v518 = vmax.f32 %v516, %v499
        %v519 = vmax.f32 %v517, %v500
        %v520 = vmax.f32 %v518, %v502
        %v521 = vmax.f32 %v519, %v503
        %v522 = vmax.f32 %v520, %v505
        %v523 = vmax.f32 %v521, %v506
        %v524 = vmax.f32 %v522, %v508
        %v525 = vmax.f32 %v523, %v509
        %v526 = vmax.f32 %v524, %v511
        %v527 = vmax.f32 %v525, %v512
        %v528 = vmax.f32 %v526, %v514
        %v529 = vmax.f32 %v527, %v515
        %v530 = vsub.f32 %v493, %v528
        %v531 = vsub.f32 %v494, %v529
        %v532 = vmul.f32 %v530, 1.442695
        %v533 = vpow.pop %v532
        %v534 = vmul.f32 %v531, 1.442695
        %v535 = vpow.pop %v534
        %v536 = vadd.f32 %v533, 0.0
        %v537 = vadd.f32 %v535, 0.0
        %vm538 = vcmp.eq.f32.partialorder %v490, 0.0
        %vm539 = vcmp.eq.f32.partialorder %v491, 0.0
        %v540 = vsel %vm538, %v493, 0.0
        %v541 = vsel %vm539, %v494, 0.0
        %v542 = vadd.f32 %v540, 0.0
        %v543 = vadd.f32 %v541, 0.0
        %v544 = vsub.f32 %v496, %v528
        %v545 = vsub.f32 %v497, %v529
        %v546 = vmul.f32 %v544, 1.442695
        %v547 = vpow.pop %v546
        %v548 = vmul.f32 %v545, 1.442695
        %v549 = vpow.pop %v548
        %v550 = vadd.f32 %v536, %v547
        %v551 = vadd.f32 %v537, %v549
        %vm552 = vcmp.eq.f32.partialorder %v490, 1.0
        %vm553 = vcmp.eq.f32.partialorder %v491, 1.0
        %v554 = vsel %vm552, %v496, 0.0
        %v555 = vsel %vm553, %v497, 0.0
        %v556 = vadd.f32 %v542, %v554
        %v557 = vadd.f32 %v543, %v555
        %v558 = vsub.f32 %v499, %v528
        %v559 = vsub.f32 %v500, %v529
        %v560 = vmul.f32 %v558, 1.442695
        %v561 = vpow.pop %v560
        %v562 = vmul.f32 %v559, 1.442695
        %v563 = vpow.pop %v562
        %v564 = vadd.f32 %v550, %v561
        %v565 = vadd.f32 %v551, %v563
        %vm566 = vcmp.eq.f32.partialorder %v490, 2.0
        %vm567 = vcmp.eq.f32.partialorder %v491, 2.0
        %v568 = vsel %vm566, %v499, 0.0
        %v569 = vsel %vm567, %v500, 0.0
        %v570 = vadd.f32 %v556, %v568
        %v571 = vadd.f32 %v557, %v569
        %v572 = vsub.f32 %v502, %v528
        %v573 = vsub.f32 %v503, %v529
        %v574 = vmul.f32 %v572, 1.442695
        %v575 = vpow.pop %v574
        %v576 = vmul.f32 %v573, 1.442695
        %v577 = vpow.pop %v576
        %v578 = vadd.f32 %v564, %v575
        %v579 = vadd.f32 %v565, %v577
        %vm580 = vcmp.eq.f32.partialorder %v490, 3.0
        %vm581 = vcmp.eq.f32.partialorder %v491, 3.0
        %v582 = vsel %vm580, %v502, 0.0
        %v583 = vsel %vm581, %v503, 0.0
        %v584 = vadd.f32 %v570, %v582
        %v585 = vadd.f32 %v571, %v583
        %v586 = vsub.f32 %v505, %v528
        %v587 = vsub.f32 %v506, %v529
        %v588 = vmul.f32 %v586, 1.442695
        %v589 = vpow.pop %v588
        %v590 = vmul.f32 %v587, 1.442695
        %v591 = vpow.pop %v590
        %v592 = vadd.f32 %v578, %v589
        %v593 = vadd.f32 %v579, %v591
        %vm594 = vcmp.eq.f32.partialorder %v490, 4.0
        %vm595 = vcmp.eq.f32.partialorder %v491, 4.0
        %v596 = vsel %vm594, %v505, 0.0
        %v597 = vsel %vm595, %v506, 0.0
        %v598 = vadd.f32 %v584, %v596
        %v599 = vadd.f32 %v585, %v597
        %v600 = vsub.f32 %v508, %v528
        %v601 = vsub.f32 %v509, %v529
        %v602 = vmul.f32 %v600, 1.442695
        %v603 = vpow.pop %v602
        %v604 = vmul.f32 %v601, 1.442695
        %v605 = vpow.pop %v604
        %v606 = vadd.f32 %v592, %v603
        %v607 = vadd.f32 %v593, %v605
        %vm608 = vcmp.eq.f32.partialorder %v490, 5.0
        %vm609 = vcmp.eq.f32.partialorder %v491, 5.0
        %v610 = vsel %vm608, %v508, 0.0
        %v611 = vsel %vm609, %v509, 0.0
        %v612 = vadd.f32 %v598, %v610
        %v613 = vadd.f32 %v599, %v611
        %v614 = vsub.f32 %v511, %v528
        %v615 = vsub.f32 %v512, %v529
        %v616 = vmul.f32 %v614, 1.442695
        %v617 = vpow.pop %v616
        %v618 = vmul.f32 %v615, 1.442695
        %v619 = vpow.pop %v618
        %v620 = vadd.f32 %v606, %v617
        %v621 = vadd.f32 %v607, %v619
        %vm622 = vcmp.eq.f32.partialorder %v490, 6.0
        %vm623 = vcmp.eq.f32.partialorder %v491, 6.0
        %v624 = vsel %vm622, %v511, 0.0
        %v625 = vsel %vm623, %v512, 0.0
        %v626 = vadd.f32 %v612, %v624
        %v627 = vadd.f32 %v613, %v625
        %v628 = vsub.f32 %v514, %v528
        %v629 = vsub.f32 %v515, %v529
        %v630 = vmul.f32 %v628, 1.442695
        %v631 = vpow.pop %v630
        %v632 = vmul.f32 %v629, 1.442695
        %v633 = vpow.pop %v632
        %v634 = vadd.f32 %v620, %v631
        %v635 = vadd.f32 %v621, %v633
        %vm636 = vcmp.eq.f32.partialorder %v490, 7.0
        %vm637 = vcmp.eq.f32.partialorder %v491, 7.0
        %v638 = vsel %vm636, %v514, 0.0
        %v639 = vsel %vm637, %v515, 0.0
        %v640 = vadd.f32 %v626, %v638
        %v641 = vadd.f32 %v627, %v639
        %v642 = vlog2.pop %v634
        %v643 = vmul.f32 %v642, 0.6931472
        %v644 = vlog2.pop %v635
        %v645 = vmul.f32 %v644, 0.6931472
        %v646 = vadd.f32 %v528, %v643
        %v647 = vadd.f32 %v529, %v645
        %v648 = vsub.f32 %v646, %v640
        %v649 = vsub.f32 %v647, %v641
        %v650 = vsel %vm301, %v333, 0.0
        %v651 = vsel %vm302, %v334, 0.0
        %v652 = vadd.f32 %v650, %v651
        %v653 = vsel %vm301, 1.0, 0.0
        %v654 = vsel %vm302, 1.0, 0.0
        %v655 = vadd.f32 %v653, %v654
        %v656 = vsel %vm299, %v453, 0.0
        %v657 = vsel %vm300, %v454, 0.0
        %v658 = vadd.f32 %v656, %v657
        %v659 = vsel %vm299, 1.0, 0.0
        %v660 = vsel %vm300, 1.0, 0.0
        %v661 = vadd.f32 %v659, %v660
        %v662 = vsel %vm299, %v487, 0.0
        %v663 = vsel %vm300, %v488, 0.0
        %v664 = vadd.f32 %v662, %v663
        %v665 = vsel %vm299, %v648, 0.0
        %v666 = vsel %vm300, %v649, 0.0
        %v667 = vadd.f32 %v665, %v666
        %s668 = smul.u32 %s280, 48
        %s669 = scalar_lea.vmem %s274, %s668 [#allocation9]
        %v670 = vld [vmem:[%s669] sm:$0xff]
        %v671 = vadd.f32 %v670, %v652
        %672 = vst [vmem:[%s669] sm:$0xff] %v671
        %s673 = sadd.s32 %s668, 8
        %s674 = scalar_lea.vmem %s274, %s673 [#allocation9]
        %v675 = vld [vmem:[%s674] sm:$0xff]
        %v676 = vadd.f32 %v675, %v655
        %677 = vst [vmem:[%s674] sm:$0xff] %v676
        %s678 = sadd.s32 %s668, 16
        %s679 = scalar_lea.vmem %s274, %s678 [#allocation9]
        %v680 = vld [vmem:[%s679] sm:$0xff]
        %v681 = vadd.f32 %v680, %v658
        %682 = vst [vmem:[%s679] sm:$0xff] %v681
        %s683 = sadd.s32 %s668, 24
        %s684 = scalar_lea.vmem %s274, %s683 [#allocation9]
        %v685 = vld [vmem:[%s684] sm:$0xff]
        %v686 = vadd.f32 %v685, %v661
        %687 = vst [vmem:[%s684] sm:$0xff] %v686
        %s688 = sadd.s32 %s668, 32
        %s689 = scalar_lea.vmem %s274, %s688 [#allocation9]
        %v690 = vld [vmem:[%s689] sm:$0xff]
        %v691 = vadd.f32 %v690, %v664
        %692 = vst [vmem:[%s689] sm:$0xff] %v691
        %s693 = sadd.s32 %s668, 40
        %s694 = scalar_lea.vmem %s274, %s693 [#allocation9]
        %v695 = vld [vmem:[%s694] sm:$0xff]
        %v696 = vadd.f32 %v695, %v667
        %697 = vst [vmem:[%s694] sm:$0xff] %v696
        %s698 = sand.u32 %s103, 1
        %s699 = scalar_lea.sflag [#allocation6], %s698
        %s700 = sand.u32 %s103, 1
        %s701 = smul.addr %s700, 96
        %s702 = scalar_lea.vmem [#allocation9], %s701
        // Predicated region
        $region41: #{tpu_custom_call.1} parent=27 // pred_check
          %p703 = pneg %p113
        $region42: #{tpu_custom_call.1} parent=27 // pred_check_branch
          %705 = sbr.rel (%p703) target = $region44
        $region43: #{tpu_custom_call.1} parent=27 // pred_region
          %s707 = ssub.s32 1536, 1536
          %708 = vsyncadd %s699, %s707
          %s709 = smul.addr %s31, 12
          %s710 = smul.addr %s709, 128
          %s711 = scalar_lea.hbm %s3, %s710
          %s712 = sshll.u32 %s702, 4
          %s713 = int_to_ptr.vmem [resolvable:$true] %s712
          %718 = dma.vmem_to_hbm [thread:$0]  %s713, 1536, %s711, %s699, 128, 128, 8
        $region44: #{tpu_custom_call.1} parent=27 // pred_fallthru
          _
      $region28: #{tpu_custom_call.1} parent=5 // pred_fallthru
        _
      %p719 = scmp.le.s32.totalorder 2, %s22
      // Predicated region
      $region45: #{tpu_custom_call.1} parent=5 // pred_check
        %p720 = pneg %p719
      $region46: #{tpu_custom_call.1} parent=5 // pred_check_branch
        %722 = sbr.rel (%p720) target = $region48
      $region47: #{tpu_custom_call.1} parent=5 // pred_region
        %s723 = ssub.s32 %s22, 2
        // Predicated region
        $region49: #{tpu_custom_call.1} parent=47 // pred_check
          %p724 = pneg %p119
        $region50: #{tpu_custom_call.1} parent=47 // pred_check_branch
          %726 = sbr.rel (%p724) target = $region52
        $region51: #{tpu_custom_call.1} parent=47 // pred_region
          %s727 = sand.u32 %s104, 1
          %s728 = scalar_lea.sflag [#allocation6], %s727
          %s729 = sand.u32 %s104, 1
          %s730 = smul.addr %s729, 96
          %s731 = scalar_lea.vmem [#allocation9], %s730
          %732 = dma.done %s728, 1536
        $region52: #{tpu_custom_call.1} parent=47 // pred_fallthru
          _
      $region48: #{tpu_custom_call.1} parent=5 // pred_fallthru
        _
    $region6: #{tpu_custom_call.1} parent=1 // loop_footer
      %s26 = sadd.s32 1, %s22
    $region7: #{tpu_custom_call.1} parent=1 // loop_footer_branch
      %21 = sbr.rel target = $region3
    $region8: #{tpu_custom_call.1} parent=1 // loop_exit
      _
    %733 = vsyncpa [#allocation5], 1
    %s734 = scalar_lea.sflag [#allocation5], 1
    %735 = vsyncpa %s734, 1
    %736 = vsyncpa [#allocation8], 1
    %s737 = scalar_lea.sflag [#allocation8], 1
    %738 = vsyncpa %s737, 1
    %739 = vsyncpa [#allocation6], 1
    %s740 = scalar_lea.sflag [#allocation6], 1
    %741 = vsyncpa %s740, 1

</llo_original>
